<compile_context>
chip_gen: v5e
topology: v5e:2x2
jax: 0.10.0
libtpu: 0.0.40
codegen_flags: <defaults>
</compile_context>

<pallas_src>
import math

import jax
import jax.numpy as jnp
from jax.experimental import pallas as pl
from jax.experimental.pallas import tpu as pltpu


def _add3_kernel(a_ref, b_ref, c_ref, o_ref):
    # o = (a + b) + c — single VPU pass over the lane-dense tile.
    o_ref[...] = (a_ref[...] + b_ref[...]) + c_ref[...]


def _sublane_pack(dtype) -> int:
    """Packed-sublane factor: 8 for 32-bit, 16 for 16-bit, 32 for 8-bit."""
    itemsize = jnp.dtype(dtype).itemsize
    return max(8, 32 // max(1, int(itemsize)))


# Per-tensor size above which we switch from a single whole-array block to a
# 1-D gridded pipeline (keeps 3 inputs + 1 output well under the default
# scoped-VMEM limit on every generation, including v7x's smaller VMEM).
_SMALL_LIMIT_BYTES = 2 * 1024 * 1024

# Gridded-path tile: lane-dense (multiple of 128) and sublane-packed for all
# supported dtypes (256 is a multiple of 8, 16 and 32).
_GRID_LANES = 1024
_GRID_ROW_BLOCK = 256


def add3(x649, x635, x664):
    """Computes x664 + (x649 + x635) with a Pallas TPU kernel.

    All inputs must share the same shape and dtype (NCHW in the reference).
    """
    assert x649.shape == x635.shape == x664.shape
    assert x649.dtype == x635.dtype == x664.dtype

    orig_shape = x649.shape
    dtype = x649.dtype
    total = int(math.prod(orig_shape)) if orig_shape else 1
    sublane = _sublane_pack(dtype)
    bytes_per_tensor = total * jnp.dtype(dtype).itemsize

    a = x649.reshape(-1)
    b = x635.reshape(-1)
    c = x664.reshape(-1)

    if bytes_per_tensor <= _SMALL_LIMIT_BYTES:
        # --- Small path: single whole-array block, no grid. ---------------
        # Lane-maximizing layout: (sublane, total // sublane).  Pad (rarely)
        # if total is not a multiple of the packed-sublane factor so we never
        # fall back to a sublane-sparse (1, total) layout.
        pad = (-total) % sublane
        padded = total + pad
        if pad:
            a = jnp.pad(a, (0, pad))
            b = jnp.pad(b, (0, pad))
            c = jnp.pad(c, (0, pad))
        flat_shape = (sublane, padded // sublane)
        a = a.reshape(flat_shape)
        b = b.reshape(flat_shape)
        c = c.reshape(flat_shape)

        # Block dims equal the full array dims, so the (8, 128) divisibility
        # constraint does not apply; ~110 KiB per f32 tensor at the module's
        # shape — comfortably within VMEM, no grid needed.
        spec = pl.BlockSpec(flat_shape, lambda: (0, 0))

        out = pl.pallas_call(
            _add3_kernel,
            out_shape=jax.ShapeDtypeStruct(flat_shape, dtype),
            grid=(),
            in_specs=[spec, spec, spec],
            out_specs=spec,
        )(a, b, c)

        out = out.reshape(-1)
        if pad:
            out = out[:total]
        return out.reshape(orig_shape)

    # --- Large path: 1-D row grid, lane-dense (256, 1024) blocks. ---------
    chunk = _GRID_LANES * _GRID_ROW_BLOCK
    pad = (-total) % chunk
    padded = total + pad
    if pad:
        a = jnp.pad(a, (0, pad))
        b = jnp.pad(b, (0, pad))
        c = jnp.pad(c, (0, pad))
    rows = padded // _GRID_LANES
    flat_shape = (rows, _GRID_LANES)
    a = a.reshape(flat_shape)
    b = b.reshape(flat_shape)
    c = c.reshape(flat_shape)

    spec = pl.BlockSpec((_GRID_ROW_BLOCK, _GRID_LANES), lambda i: (i, 0))

    out = pl.pallas_call(
        _add3_kernel,
        out_shape=jax.ShapeDtypeStruct(flat_shape, dtype),
        grid=(rows // _GRID_ROW_BLOCK,),
        in_specs=[spec, spec, spec],
        out_specs=spec,
        compiler_params=pltpu.CompilerParams(
            dimension_semantics=("parallel",)  # shards across v7x's two TCs
        ),
    )(a, b, c)

    out = out.reshape(-1)
    if pad:
        out = out[:total]
    return out.reshape(orig_shape)


if __name__ == "__main__":
    key = jax.random.PRNGKey(0)
    k1, k2, k3 = jax.random.split(key, 3)

    shape = (1, 576, 7, 7)  # matches the module's input shapes
    x635 = jax.random.normal(k1, shape, dtype=jnp.float32)
    x649 = jax.random.normal(k2, shape, dtype=jnp.float32)
    x664 = jax.random.normal(k3, shape, dtype=jnp.float32)

    out = add3(x649, x635, x664)
    out = jax.block_until_ready(out)

    ref = x664 + (x649 + x635)
    assert out.shape == shape
    assert jnp.allclose(out, ref, atol=1e-6, rtol=1e-6)

    print("KERNEL_OK")
</pallas_src>

<mosaic_0001>
module attributes {stable_mosaic.version = 11 : i64} {
  func.func @_add3_kernel(%arg0: memref<8x3528xf32, #tpu.memory_space<vmem>>, %arg1: memref<8x3528xf32, #tpu.memory_space<vmem>>, %arg2: memref<8x3528xf32, #tpu.memory_space<vmem>>, %arg3: memref<8x3528xf32, #tpu.memory_space<vmem>>) attributes {dimension_semantics = [], scalar_prefetch = 0 : i64, scratch_operands = 0 : i64, tpu.core_type = #tpu.core_type<tc>} {
    %c0 = arith.constant 0 : index
    %c0_0 = arith.constant 0 : index
    %0 = vector.load %arg0[%c0, %c0_0] : memref<8x3528xf32, #tpu.memory_space<vmem>>, vector<8x3528xf32>
    %c0_1 = arith.constant 0 : index
    %c0_2 = arith.constant 0 : index
    %1 = vector.load %arg1[%c0_1, %c0_2] : memref<8x3528xf32, #tpu.memory_space<vmem>>, vector<8x3528xf32>
    %2 = arith.addf %0, %1 : vector<8x3528xf32>
    %c0_3 = arith.constant 0 : index
    %c0_4 = arith.constant 0 : index
    %3 = vector.load %arg2[%c0_3, %c0_4] : memref<8x3528xf32, #tpu.memory_space<vmem>>, vector<8x3528xf32>
    %4 = arith.addf %2, %3 : vector<8x3528xf32>
    %c0_5 = arith.constant 0 : index
    %c0_6 = arith.constant 0 : index
    %5 = vector.load %arg3[%c0_5, %c0_6] : memref<8x3528xf32, #tpu.memory_space<vmem>>, vector<8x3528xf32>
    tpu.vector_store %arg3[%c0_5, %c0_6], %4 {strides = array<i32>} : memref<8x3528xf32, #tpu.memory_space<vmem>>, vector<8x3528xf32>,
    return
  }
}

</mosaic_0001>

<llo_original>
// kernel: tpu_custom_call.1
$region0: #{tpu_custom_call.1}
  #allocation0 [shape = 'u32[]', space=smem, size = 0x4, offset = 0x4, fixed_abs, tag = 'smem constant byte address 0x4 - core index']
  #allocation1 [shape = 'u32[72,128]{1,0:T(1,128)}', space=vmem, size = 0x9000, scoped, tag = 'internal scratch']
  %s0 = inlined_call_operand.hbm [shape: f32[8,3528], index: 0, kind: input, shape index: {}]
  %s1 = inlined_call_operand.hbm [shape: f32[8,3528], index: 1, kind: input, shape index: {}]
  %s2 = inlined_call_operand.hbm [shape: f32[8,3528], index: 2, kind: input, shape index: {}]
  %s3 = inlined_call_operand.hbm [shape: f32[8,3528], index: 3, kind: output, shape index: {}]
  %s4 = sld [smem:[#allocation0]]
  $region34: #{tpu_custom_call.1} parent=0
    _
  %s6 = ssub.s32 1, %s4
  %s7 = scalar_select 0, %s6, %s4
  $region1: #{tpu_custom_call.1} parent=0
    #allocation2 [shape = 'u8[114688]{0}', space=vmem, size = 0x1c000, scoped, tag = 'input window, operand 0, single buffered']
    #allocation3 [shape = 's32[1]{0}', space=sflag, size = 0x4, scoped, tag = 'scoped memory for tpu_custom_call.1']
    #allocation4 [shape = 's32[1]{0}', space=sflag, size = 0x4, scoped, tag = 'scoped memory for tpu_custom_call.1']
    #allocation5 [shape = 'u8[114688]{0}', space=vmem, size = 0x1c000, scoped, tag = 'input window, operand 1, single buffered']
    #allocation6 [shape = 's32[1]{0}', space=sflag, size = 0x4, scoped, tag = 'scoped memory for tpu_custom_call.1']
    #allocation7 [shape = 'u8[114688]{0}', space=vmem, size = 0x1c000, scoped, tag = 'input window, operand 2, single buffered']
    #allocation8 [shape = 'u8[114688]{0}', space=vmem, size = 0x1c000, scoped, tag = 'output window, operand 0, single buffered']
    %8 = vsyncpa [#allocation3], 0
    %9 = vsyncpa [#allocation6], 0
    %10 = vsyncpa [#allocation4], 0
    // Predicated region
    $region2: #{tpu_custom_call.1} parent=1 // pred_check
      _
    $region3: #{tpu_custom_call.1} parent=1 // pred_check_branch
      %12 = sbr.rel (0) target = $region5
    $region4: #{tpu_custom_call.1} parent=1 // pred_region
      %14 = vsyncadd [#allocation3], 0
      %s16 = sshll.u32 %s0, 4
      %s17 = int_to_ptr.hbm [resolvable:$true] %s16
      %s18 = sshll.u32 [#allocation2], 4
      %s19 = int_to_ptr.vmem [resolvable:$true] %s18
      %21 = dma.hbm_to_vmem [thread:$0]  %s17, 3584, %s19, [#allocation3]
    $region5: #{tpu_custom_call.1} parent=1 // pred_fallthru
      _
    // Predicated region
    $region6: #{tpu_custom_call.1} parent=1 // pred_check
      _
    $region7: #{tpu_custom_call.1} parent=1 // pred_check_branch
      %23 = sbr.rel (0) target = $region9
    $region8: #{tpu_custom_call.1} parent=1 // pred_region
      %25 = vsyncadd [#allocation6], 0
      %s27 = sshll.u32 %s1, 4
      %s28 = int_to_ptr.hbm [resolvable:$true] %s27
      %s29 = sshll.u32 [#allocation5], 4
      %s30 = int_to_ptr.vmem [resolvable:$true] %s29
      %32 = dma.hbm_to_vmem [thread:$0]  %s28, 3584, %s30, [#allocation6]
    $region9: #{tpu_custom_call.1} parent=1 // pred_fallthru
      _
    // Predicated region
    $region10: #{tpu_custom_call.1} parent=1 // pred_check
      _
    $region11: #{tpu_custom_call.1} parent=1 // pred_check_branch
      %34 = sbr.rel (0) target = $region13
    $region12: #{tpu_custom_call.1} parent=1 // pred_region
      %36 = vsyncadd [#allocation6], 0
      %s38 = sshll.u32 %s2, 4
      %s39 = int_to_ptr.hbm [resolvable:$true] %s38
      %s40 = sshll.u32 [#allocation7], 4
      %s41 = int_to_ptr.vmem [resolvable:$true] %s40
      %43 = dma.hbm_to_vmem [thread:$0]  %s39, 3584, %s41, [#allocation6]
    $region13: #{tpu_custom_call.1} parent=1 // pred_fallthru
      _
    // Predicated region
    $region14: #{tpu_custom_call.1} parent=1 // pred_check
      _
    $region15: #{tpu_custom_call.1} parent=1 // pred_check_branch
      %45 = sbr.rel (0) target = $region17
    $region16: #{tpu_custom_call.1} parent=1 // pred_region
      %47 = dma.done [#allocation3], 3584
    $region17: #{tpu_custom_call.1} parent=1 // pred_fallthru
      _
    // Predicated region
    $region18: #{tpu_custom_call.1} parent=1 // pred_check
      _
    $region19: #{tpu_custom_call.1} parent=1 // pred_check_branch
      %49 = sbr.rel (0) target = $region21
    $region20: #{tpu_custom_call.1} parent=1 // pred_region
      %51 = dma.done [#allocation6], 3584
    $region21: #{tpu_custom_call.1} parent=1 // pred_fallthru
      _
    // Predicated region
    $region22: #{tpu_custom_call.1} parent=1 // pred_check
      _
    $region23: #{tpu_custom_call.1} parent=1 // pred_check_branch
      %53 = sbr.rel (0) target = $region25
    $region24: #{tpu_custom_call.1} parent=1 // pred_region
      %55 = dma.done [#allocation6], 3584
    $region25: #{tpu_custom_call.1} parent=1 // pred_fallthru
      _
    %v56 = vld [vmem:[#allocation2] sm:$0xff]
    %v57 = vld [vmem:[#allocation2 + $0x8] sm:$0xff]
    %v58 = vld [vmem:[#allocation2 + $0x10] sm:$0xff]
    %v59 = vld [vmem:[#allocation2 + $0x18] sm:$0xff]
    %v60 = vld [vmem:[#allocation2 + $0x20] sm:$0xff]
    %v61 = vld [vmem:[#allocation2 + $0x28] sm:$0xff]
    %v62 = vld [vmem:[#allocation2 + $0x30] sm:$0xff]
    %v63 = vld [vmem:[#allocation2 + $0x38] sm:$0xff]
    %v64 = vld [vmem:[#allocation2 + $0x40] sm:$0xff]
    %v65 = vld [vmem:[#allocation2 + $0x48] sm:$0xff]
    %v66 = vld [vmem:[#allocation2 + $0x50] sm:$0xff]
    %v67 = vld [vmem:[#allocation2 + $0x58] sm:$0xff]
    %v68 = vld [vmem:[#allocation2 + $0x60] sm:$0xff]
    %v69 = vld [vmem:[#allocation2 + $0x68] sm:$0xff]
    %v70 = vld [vmem:[#allocation2 + $0x70] sm:$0xff]
    %v71 = vld [vmem:[#allocation2 + $0x78] sm:$0xff]
    %v72 = vld [vmem:[#allocation2 + $0x80] sm:$0xff]
    %v73 = vld [vmem:[#allocation2 + $0x88] sm:$0xff]
    %v74 = vld [vmem:[#allocation2 + $0x90] sm:$0xff]
    %v75 = vld [vmem:[#allocation2 + $0x98] sm:$0xff]
    %v76 = vld [vmem:[#allocation2 + $0xa0] sm:$0xff]
    %v77 = vld [vmem:[#allocation2 + $0xa8] sm:$0xff]
    %v78 = vld [vmem:[#allocation2 + $0xb0] sm:$0xff]
    %v79 = vld [vmem:[#allocation2 + $0xb8] sm:$0xff]
    %v80 = vld [vmem:[#allocation2 + $0xc0] sm:$0xff]
    %v81 = vld [vmem:[#allocation2 + $0xc8] sm:$0xff]
    %v82 = vld [vmem:[#allocation2 + $0xd0] sm:$0xff]
    %v83 = vld [vmem:[#allocation2 + $0xd8] sm:$0xff]
    %v84 = vld [vmem:[#allocation5] sm:$0xff]
    %v85 = vld [vmem:[#allocation5 + $0x8] sm:$0xff]
    %v86 = vld [vmem:[#allocation5 + $0x10] sm:$0xff]
    %v87 = vld [vmem:[#allocation5 + $0x18] sm:$0xff]
    %v88 = vld [vmem:[#allocation5 + $0x20] sm:$0xff]
    %v89 = vld [vmem:[#allocation5 + $0x28] sm:$0xff]
    %v90 = vld [vmem:[#allocation5 + $0x30] sm:$0xff]
    %v91 = vld [vmem:[#allocation5 + $0x38] sm:$0xff]
    %v92 = vld [vmem:[#allocation5 + $0x40] sm:$0xff]
    %v93 = vld [vmem:[#allocation5 + $0x48] sm:$0xff]
    %v94 = vld [vmem:[#allocation5 + $0x50] sm:$0xff]
    %v95 = vld [vmem:[#allocation5 + $0x58] sm:$0xff]
    %v96 = vld [vmem:[#allocation5 + $0x60] sm:$0xff]
    %v97 = vld [vmem:[#allocation5 + $0x68] sm:$0xff]
    %v98 = vld [vmem:[#allocation5 + $0x70] sm:$0xff]
    %v99 = vld [vmem:[#allocation5 + $0x78] sm:$0xff]
    %v100 = vld [vmem:[#allocation5 + $0x80] sm:$0xff]
    %v101 = vld [vmem:[#allocation5 + $0x88] sm:$0xff]
    %v102 = vld [vmem:[#allocation5 + $0x90] sm:$0xff]
    %v103 = vld [vmem:[#allocation5 + $0x98] sm:$0xff]
    %v104 = vld [vmem:[#allocation5 + $0xa0] sm:$0xff]
    %v105 = vld [vmem:[#allocation5 + $0xa8] sm:$0xff]
    %v106 = vld [vmem:[#allocation5 + $0xb0] sm:$0xff]
    %v107 = vld [vmem:[#allocation5 + $0xb8] sm:$0xff]
    %v108 = vld [vmem:[#allocation5 + $0xc0] sm:$0xff]
    %v109 = vld [vmem:[#allocation5 + $0xc8] sm:$0xff]
    %v110 = vld [vmem:[#allocation5 + $0xd0] sm:$0xff]
    %v111 = vld [vmem:[#allocation5 + $0xd8] sm:$0xff]
    %v112 = vadd.f32 %v56, %v84
    %v113 = vadd.f32 %v57, %v85
    %v114 = vadd.f32 %v58, %v86
    %v115 = vadd.f32 %v59, %v87
    %v116 = vadd.f32 %v60, %v88
    %v117 = vadd.f32 %v61, %v89
    %v118 = vadd.f32 %v62, %v90
    %v119 = vadd.f32 %v63, %v91
    %v120 = vadd.f32 %v64, %v92
    %v121 = vadd.f32 %v65, %v93
    %v122 = vadd.f32 %v66, %v94
    %v123 = vadd.f32 %v67, %v95
    %v124 = vadd.f32 %v68, %v96
    %v125 = vadd.f32 %v69, %v97
    %v126 = vadd.f32 %v70, %v98
    %v127 = vadd.f32 %v71, %v99
    %v128 = vadd.f32 %v72, %v100
    %v129 = vadd.f32 %v73, %v101
    %v130 = vadd.f32 %v74, %v102
    %v131 = vadd.f32 %v75, %v103
    %v132 = vadd.f32 %v76, %v104
    %v133 = vadd.f32 %v77, %v105
    %v134 = vadd.f32 %v78, %v106
    %v135 = vadd.f32 %v79, %v107
    %v136 = vadd.f32 %v80, %v108
    %v137 = vadd.f32 %v81, %v109
    %v138 = vadd.f32 %v82, %v110
    %v139 = vadd.f32 %v83, %v111
    %v140 = vld [vmem:[#allocation7] sm:$0xff]
    %v141 = vld [vmem:[#allocation7 + $0x8] sm:$0xff]
    %v142 = vld [vmem:[#allocation7 + $0x10] sm:$0xff]
    %v143 = vld [vmem:[#allocation7 + $0x18] sm:$0xff]
    %v144 = vld [vmem:[#allocation7 + $0x20] sm:$0xff]
    %v145 = vld [vmem:[#allocation7 + $0x28] sm:$0xff]
    %v146 = vld [vmem:[#allocation7 + $0x30] sm:$0xff]
    %v147 = vld [vmem:[#allocation7 + $0x38] sm:$0xff]
    %v148 = vld [vmem:[#allocation7 + $0x40] sm:$0xff]
    %v149 = vld [vmem:[#allocation7 + $0x48] sm:$0xff]
    %v150 = vld [vmem:[#allocation7 + $0x50] sm:$0xff]
    %v151 = vld [vmem:[#allocation7 + $0x58] sm:$0xff]
    %v152 = vld [vmem:[#allocation7 + $0x60] sm:$0xff]
    %v153 = vld [vmem:[#allocation7 + $0x68] sm:$0xff]
    %v154 = vld [vmem:[#allocation7 + $0x70] sm:$0xff]
    %v155 = vld [vmem:[#allocation7 + $0x78] sm:$0xff]
    %v156 = vld [vmem:[#allocation7 + $0x80] sm:$0xff]
    %v157 = vld [vmem:[#allocation7 + $0x88] sm:$0xff]
    %v158 = vld [vmem:[#allocation7 + $0x90] sm:$0xff]
    %v159 = vld [vmem:[#allocation7 + $0x98] sm:$0xff]
    %v160 = vld [vmem:[#allocation7 + $0xa0] sm:$0xff]
    %v161 = vld [vmem:[#allocation7 + $0xa8] sm:$0xff]
    %v162 = vld [vmem:[#allocation7 + $0xb0] sm:$0xff]
    %v163 = vld [vmem:[#allocation7 + $0xb8] sm:$0xff]
    %v164 = vld [vmem:[#allocation7 + $0xc0] sm:$0xff]
    %v165 = vld [vmem:[#allocation7 + $0xc8] sm:$0xff]
    %v166 = vld [vmem:[#allocation7 + $0xd0] sm:$0xff]
    %v167 = vld [vmem:[#allocation7 + $0xd8] sm:$0xff]
    %v168 = vadd.f32 %v112, %v140
    %v169 = vadd.f32 %v113, %v141
    %v170 = vadd.f32 %v114, %v142
    %v171 = vadd.f32 %v115, %v143
    %v172 = vadd.f32 %v116, %v144
    %v173 = vadd.f32 %v117, %v145
    %v174 = vadd.f32 %v118, %v146
    %v175 = vadd.f32 %v119, %v147
    %v176 = vadd.f32 %v120, %v148
    %v177 = vadd.f32 %v121, %v149
    %v178 = vadd.f32 %v122, %v150
    %v179 = vadd.f32 %v123, %v151
    %v180 = vadd.f32 %v124, %v152
    %v181 = vadd.f32 %v125, %v153
    %v182 = vadd.f32 %v126, %v154
    %v183 = vadd.f32 %v127, %v155
    %v184 = vadd.f32 %v128, %v156
    %v185 = vadd.f32 %v129, %v157
    %v186 = vadd.f32 %v130, %v158
    %v187 = vadd.f32 %v131, %v159
    %v188 = vadd.f32 %v132, %v160
    %v189 = vadd.f32 %v133, %v161
    %v190 = vadd.f32 %v134, %v162
    %v191 = vadd.f32 %v135, %v163
    %v192 = vadd.f32 %v136, %v164
    %v193 = vadd.f32 %v137, %v165
    %v194 = vadd.f32 %v138, %v166
    %v195 = vadd.f32 %v139, %v167
    %196 = vst [vmem:[#allocation8] sm:$0xff] %v168
    %197 = vst [vmem:[#allocation8 + $0x8] sm:$0xff] %v169
    %198 = vst [vmem:[#allocation8 + $0x10] sm:$0xff] %v170
    %199 = vst [vmem:[#allocation8 + $0x18] sm:$0xff] %v171
    %200 = vst [vmem:[#allocation8 + $0x20] sm:$0xff] %v172
    %201 = vst [vmem:[#allocation8 + $0x28] sm:$0xff] %v173
    %202 = vst [vmem:[#allocation8 + $0x30] sm:$0xff] %v174
    %203 = vst [vmem:[#allocation8 + $0x38] sm:$0xff] %v175
    %204 = vst [vmem:[#allocation8 + $0x40] sm:$0xff] %v176
    %205 = vst [vmem:[#allocation8 + $0x48] sm:$0xff] %v177
    %206 = vst [vmem:[#allocation8 + $0x50] sm:$0xff] %v178
    %207 = vst [vmem:[#allocation8 + $0x58] sm:$0xff] %v179
    %208 = vst [vmem:[#allocation8 + $0x60] sm:$0xff] %v180
    %209 = vst [vmem:[#allocation8 + $0x68] sm:$0xff] %v181
    %210 = vst [vmem:[#allocation8 + $0x70] sm:$0xff] %v182
    %211 = vst [vmem:[#allocation8 + $0x78] sm:$0xff] %v183
    %212 = vst [vmem:[#allocation8 + $0x80] sm:$0xff] %v184
    %213 = vst [vmem:[#allocation8 + $0x88] sm:$0xff] %v185
    %214 = vst [vmem:[#allocation8 + $0x90] sm:$0xff] %v186
    %215 = vst [vmem:[#allocation8 + $0x98] sm:$0xff] %v187
    %216 = vst [vmem:[#allocation8 + $0xa0] sm:$0xff] %v188
    %217 = vst [vmem:[#allocation8 + $0xa8] sm:$0xff] %v189
    %218 = vst [vmem:[#allocation8 + $0xb0] sm:$0xff] %v190
    %219 = vst [vmem:[#allocation8 + $0xb8] sm:$0xff] %v191
    %220 = vst [vmem:[#allocation8 + $0xc0] sm:$0xff] %v192
    %221 = vst [vmem:[#allocation8 + $0xc8] sm:$0xff] %v193
    %222 = vst [vmem:[#allocation8 + $0xd0] sm:$0xff] %v194
    %vm223 = vcmask 588800
    %224 = vst.msk [vmem:[#allocation8 + $0xd8] sm:$0xff] %vm223, %v195
    // Predicated region
    $region26: #{tpu_custom_call.1} parent=1 // pred_check
      _
    $region27: #{tpu_custom_call.1} parent=1 // pred_check_branch
      %226 = sbr.rel (0) target = $region29
    $region28: #{tpu_custom_call.1} parent=1 // pred_region
      %228 = vsyncadd [#allocation4], 0
      %s230 = sshll.u32 [#allocation8], 4
      %s231 = int_to_ptr.vmem [resolvable:$true] %s230
      %s232 = sshll.u32 %s3, 4
      %s233 = int_to_ptr.hbm [resolvable:$true] %s232
      %235 = dma.vmem_to_hbm [thread:$0]  %s231, 3584, %s233, [#allocation4]
    $region29: #{tpu_custom_call.1} parent=1 // pred_fallthru
      _
    // Predicated region
    $region30: #{tpu_custom_call.1} parent=1 // pred_check
      _
    $region31: #{tpu_custom_call.1} parent=1 // pred_check_branch
      %237 = sbr.rel (0) target = $region33
    $region32: #{tpu_custom_call.1} parent=1 // pred_region
      %239 = dma.done [#allocation4], 3584
    $region33: #{tpu_custom_call.1} parent=1 // pred_fallthru
      _
    %240 = vsyncpa [#allocation3], 1
    %241 = vsyncpa [#allocation6], 1
    %242 = vsyncpa [#allocation4], 1

</llo_original>
